<compile_context>
chip_gen: v7x
topology: tpu7x:2x2x1
jax: 0.10.0
libtpu: 0.0.40
codegen_flags: <defaults>
</compile_context>

<pallas_src>
import math

import jax
import jax.numpy as jnp
from jax.experimental import pallas as pl
from jax.experimental.pallas import tpu as pltpu


def _embed_kernel(x_ref, xm_ref, w_ref, pe_ref, o_ref):
    # x_ref : (Bb, L, c_in)     raw series values (input dtype)
    # xm_ref: (Bb, L, d_inp)    time-feature covariates (input dtype)
    # w_ref : (K, d_model)      fused [tap -1 ; tap 0 ; tap +1 ; linear] weight
    # pe_ref: (L, d_model)      positional-encoding slice (f32)
    # o_ref : (Bb, L, d_model)  output block
    bb, seq_len, _ = x_ref.shape
    d_model = o_ref.shape[-1]

    w = w_ref[...]
    pe = pe_ref[...]          # already f32 — no cast

    xb = x_ref[...]           # keep input dtype; cast once right before the dot
    xmb = xm_ref[...]

    # Circular Conv1d(k=3, padding=1, circular) taps, done on-chip with an XLU
    # roll along the sequence (sublane) axis — no shifted HBM copies.
    x_prev = pltpu.roll(xb, shift=1, axis=1)             # row t -> x[t-1 mod L]
    x_next = pltpu.roll(xb, shift=seq_len - 1, axis=1)   # row t -> x[t+1 mod L]

    # Fused feature matrix [x[t-1] | x[t] | x[t+1] | x_mark[t]] : (Bb, L, K)
    feats = jnp.concatenate([x_prev, xb, x_next, xmb], axis=-1)

    # One MXU dot per grid step with M = Bb*L rows (fills the MXU M dimension
    # instead of Bb tiny L-row matmuls).
    feats2 = feats.reshape(bb * seq_len, feats.shape[-1]).astype(w.dtype)
    acc = jnp.dot(feats2, w, preferred_element_type=jnp.float32)  # (Bb*L, Dm) f32

    out = acc.reshape(bb, seq_len, d_model) + pe[None, :, :]
    o_ref[...] = out.astype(o_ref.dtype)


def data_embedding(x, x_mark, conv_w, lin_w, pe_table,
                   *, compute_dtype=jnp.bfloat16, out_dtype=None,
                   max_rows_per_step=4096, max_batch_per_step=256,
                   vmem_budget_bytes=24 * 1024 * 1024):
    """
    x:        (B, L, c_in)       input series (channels-last)
    x_mark:   (B, L, d_inp)      time features
    conv_w:   (d_model, c_in, 3) PyTorch Conv1d weight layout
    lin_w:    (d_model, d_inp)   PyTorch Linear weight layout
    pe_table: (max_len, d_model) positional-encoding table
    returns:  (B, L, d_model)    in out_dtype (default: x.dtype)

    MXU operands are cast to `compute_dtype` (default bf16, ~1e-2-level error
    vs a pure-f32 reference; accumulation and the PE add stay f32).
    """
    B, L, c_in = x.shape
    d_model = conv_w.shape[0]
    d_inp = x_mark.shape[-1]
    assert conv_w.shape == (d_model, c_in, 3)
    assert lin_w.shape == (d_model, d_inp)
    out_dtype = x.dtype if out_dtype is None else jnp.dtype(out_dtype)

    # Fused weight rows = [W_conv[:,:,0]^T ; W_conv[:,:,1]^T ; W_conv[:,:,2]^T ; W_lin^T]
    # so that  out[t] = x[t-1]@W0^T + x[t]@W1^T + x[t+1]@W2^T + x_mark[t]@Wlin^T.
    w_full = jnp.concatenate(
        [conv_w[:, :, k].T for k in range(3)] + [lin_w.T], axis=0
    ).astype(compute_dtype)                                   # (K, d_model)
    pe = pe_table[:L, :].astype(jnp.float32)                  # (L, d_model)

    # ---- batch-block (Bb) selection --------------------------------------
    # Target ~max_rows_per_step rows per grid step (amortizes the ~0.35 us
    # per-step pipeline overhead) while keeping the double-buffered in/out
    # blocks + in-kernel f32 intermediates + resident weight/PE under a VMEM
    # budget that is safe on every generation (v7x scoped default is 32 MiB).
    in_sz = jnp.dtype(x.dtype).itemsize
    out_sz = jnp.dtype(out_dtype).itemsize
    bytes_per_b = L * (2 * (c_in + d_inp) * in_sz        # 2x-buffered inputs
                       + 2 * d_model * out_sz            # 2x-buffered output
                       + 2 * d_model * 4)                # f32 acc + out temp
    resident = 2 * ((3 * c_in + d_inp) * d_model * jnp.dtype(compute_dtype).itemsize
                    + L * d_model * 4)
    budget = max(int(vmem_budget_bytes) - resident, int(bytes_per_b))

    bb = max(1, min(int(max_batch_per_step),
                    max(1, int(max_rows_per_step) // max(L, 1)),
                    max(1, budget // int(bytes_per_b)),
                    B))
    if B >= 2:
        # Guarantee >= 2 grid steps so dimension_semantics=("parallel",) can
        # shard the batch-block axis across v7x's two TensorCores.
        bb = min(bb, pl.cdiv(B, 2))
    grid = (pl.cdiv(B, bb),)   # partial last block handled by Pallas (rows are
                               # independent; out-of-range writes are dropped)

    out = pl.pallas_call(
        _embed_kernel,
        out_shape=jax.ShapeDtypeStruct((B, L, d_model), out_dtype),
        grid=grid,
        in_specs=[
            pl.BlockSpec((bb, L, c_in), lambda i: (i, 0, 0)),
            pl.BlockSpec((bb, L, d_inp), lambda i: (i, 0, 0)),
            pl.BlockSpec((3 * c_in + d_inp, d_model), lambda i: (0, 0)),
            pl.BlockSpec((L, d_model), lambda i: (0, 0)),
        ],
        out_specs=pl.BlockSpec((bb, L, d_model), lambda i: (i, 0, 0)),
        compiler_params=pltpu.CompilerParams(
            dimension_semantics=("parallel",)),
    )(x, x_mark, w_full, pe)

    return out


def make_positional_table(d_model, max_len=5000):
    position = jnp.arange(max_len, dtype=jnp.float32)[:, None]
    div_term = jnp.exp(
        jnp.arange(0, d_model, 2, dtype=jnp.float32)
        * -(math.log(10000.0) / d_model))
    pe = jnp.zeros((max_len, d_model), dtype=jnp.float32)
    pe = pe.at[:, 0::2].set(jnp.sin(position * div_term))
    # div_term sliced so odd d_model also works (PyTorch code assumes even).
    pe = pe.at[:, 1::2].set(jnp.cos(position * div_term[: d_model // 2]))
    return pe


if __name__ == "__main__":
    # Small shapes consistent with the module: batch=2, seq=16, c_in=4,
    # d_model=32, freq='h' -> d_inp=4.
    B, L, C_IN, D_MODEL, D_INP = 2, 16, 4, 32, 4

    key = jax.random.PRNGKey(0)
    k_x, k_mark, k_conv, k_lin = jax.random.split(key, 4)

    x = jax.random.normal(k_x, (B, L, C_IN), dtype=jnp.float32)
    x_mark = jax.random.normal(k_mark, (B, L, D_INP), dtype=jnp.float32)

    # Conv1d weight (d_model, c_in, 3), kaiming_normal fan_in / leaky_relu:
    fan_in = C_IN * 3
    gain = math.sqrt(2.0 / (1.0 + 0.01 ** 2))
    conv_std = gain / math.sqrt(fan_in)
    conv_w = conv_std * jax.random.normal(k_conv, (D_MODEL, C_IN, 3), dtype=jnp.float32)

    # Linear weight (d_model, d_inp), PyTorch default U(-1/sqrt(fan_in), 1/sqrt(fan_in)):
    bound = 1.0 / math.sqrt(D_INP)
    lin_w = jax.random.uniform(k_lin, (D_MODEL, D_INP), dtype=jnp.float32,
                               minval=-bound, maxval=bound)

    pe_table = make_positional_table(D_MODEL)

    out = data_embedding(x, x_mark, conv_w, lin_w, pe_table)
    out = jax.block_until_ready(out)

    # Plain-JAX reference (same math; operands rounded to bf16 to mirror the
    # kernel's bf16 MXU inputs with f32 accumulation).
    shifted = [jnp.roll(x, shift=-(k - 1), axis=1) for k in range(3)]
    feats_ref = jnp.concatenate(shifted + [x_mark], axis=-1)            # (B, L, K)
    w_ref = jnp.concatenate(
        [conv_w[:, :, k].T for k in range(3)] + [lin_w.T], axis=0)      # (K, d_model)
    bf = lambda a: a.astype(jnp.bfloat16).astype(jnp.float32)
    ref = jnp.einsum("blk,kd->bld", bf(feats_ref), bf(w_ref)) + pe_table[:L][None]

    assert out.shape == (B, L, D_MODEL)
    assert out.dtype == x.dtype
    assert jnp.allclose(out, ref, atol=2e-2, rtol=2e-2), \
        float(jnp.max(jnp.abs(out - ref)))

    print("KERNEL_OK")
</pallas_src>

<mosaic_0001>
module attributes {stable_mosaic.version = 11 : i64} {
  func.func @_embed_kernel(%arg0: i32, %arg1: memref<1x16x4xf32, #tpu.memory_space<vmem>>, %arg2: memref<1x16x4xf32, #tpu.memory_space<vmem>>, %arg3: memref<16x32xbf16, #tpu.memory_space<vmem>>, %arg4: memref<16x32xf32, #tpu.memory_space<vmem>>, %arg5: memref<1x16x32xf32, #tpu.memory_space<vmem>>) attributes {dimension_semantics = [#tpu.dimension_semantics<parallel>], iteration_bounds = array<i64: 2>, scalar_prefetch = 0 : i64, scratch_operands = 0 : i64, tpu.core_type = #tpu.core_type<tc>, window_params = [{transform_indices = @transform_0, window_bounds = array<i64: 1, 16, 4>}, {transform_indices = @transform_1, window_bounds = array<i64: 1, 16, 4>}, {pipeline_mode = #tpu.pipeline_mode<synchronous>, transform_indices = @transform_2, window_bounds = array<i64: 16, 32>}, {pipeline_mode = #tpu.pipeline_mode<synchronous>, transform_indices = @transform_3, window_bounds = array<i64: 16, 32>}, {transform_indices = @transform_4, window_bounds = array<i64: 1, 16, 32>}]} {
    %c0 = arith.constant 0 : index
    %c0_0 = arith.constant 0 : index
    %0 = vector.load %arg3[%c0, %c0_0] : memref<16x32xbf16, #tpu.memory_space<vmem>>, vector<16x32xbf16>
    %c0_1 = arith.constant 0 : index
    %c0_2 = arith.constant 0 : index
    %1 = vector.load %arg4[%c0_1, %c0_2] : memref<16x32xf32, #tpu.memory_space<vmem>>, vector<16x32xf32>
    %c0_3 = arith.constant 0 : index
    %c0_4 = arith.constant 0 : index
    %c0_5 = arith.constant 0 : index
    %2 = vector.load %arg1[%c0_3, %c0_4, %c0_5] : memref<1x16x4xf32, #tpu.memory_space<vmem>>, vector<1x16x4xf32>
    %c0_6 = arith.constant 0 : index
    %c0_7 = arith.constant 0 : index
    %c0_8 = arith.constant 0 : index
    %3 = vector.load %arg2[%c0_6, %c0_7, %c0_8] : memref<1x16x4xf32, #tpu.memory_space<vmem>>, vector<1x16x4xf32>
    %c1_i32 = arith.constant 1 : i32
    %4 = tpu.dynamic_rotate %2 by %c1_i32 dim 1 : vector<1x16x4xf32>, i32 -> vector<1x16x4xf32>
    %c15_i32 = arith.constant 15 : i32
    %5 = tpu.dynamic_rotate %2 by %c15_i32 dim 1 : vector<1x16x4xf32>, i32 -> vector<1x16x4xf32>
    %6 = tpu.concatenate %4, %2, %5, %3 in 2 : vector<1x16x4xf32>, vector<1x16x4xf32>, vector<1x16x4xf32>, vector<1x16x4xf32> -> vector<1x16x16xf32>
    %7 = vector.shape_cast %6 : vector<1x16x16xf32> to vector<16x16xf32>
    %8 = arith.truncf %7 : vector<16x16xf32> to vector<16x16xbf16>
    %cst = arith.constant dense<0.000000e+00> : vector<16x32xf32>
    %9 = tpu.matmul %8, %0, %cst {dimension_numbers = #tpu.dot_dimension_numbers<[1], [0], [0], [1], [0, 0, 1, 1], [], []>} : vector<16x16xbf16>, vector<16x32xbf16>, vector<16x32xf32> -> vector<16x32xf32>
    %10 = vector.shape_cast %9 : vector<16x32xf32> to vector<1x16x32xf32>
    %11 = vector.shape_cast %1 : vector<16x32xf32> to vector<1x16x32xf32>
    %12 = arith.addf %10, %11 : vector<1x16x32xf32>
    %c0_9 = arith.constant 0 : index
    %c0_10 = arith.constant 0 : index
    %c0_11 = arith.constant 0 : index
    %13 = vector.load %arg5[%c0_9, %c0_10, %c0_11] : memref<1x16x32xf32, #tpu.memory_space<vmem>>, vector<1x16x32xf32>
    tpu.vector_store %arg5[%c0_9, %c0_10, %c0_11], %12 {strides = array<i32>} : memref<1x16x32xf32, #tpu.memory_space<vmem>>, vector<1x16x32xf32>,
    return
  }
  func.func @transform_0(%arg0: i32) -> (i32, i32, i32) {
    %c0_i32 = arith.constant 0 : i32
    %c0_i32_0 = arith.constant 0 : i32
    %c0_i32_1 = arith.constant 0 : i32
    return %arg0, %c0_i32, %c0_i32_0 : i32, i32, i32
  }
  func.func @transform_1(%arg0: i32) -> (i32, i32, i32) {
    %c0_i32 = arith.constant 0 : i32
    %c0_i32_0 = arith.constant 0 : i32
    %c0_i32_1 = arith.constant 0 : i32
    return %arg0, %c0_i32, %c0_i32_0 : i32, i32, i32
  }
  func.func @transform_2(%arg0: i32) -> (i32, i32) {
    %c0_i32 = arith.constant 0 : i32
    %c0_i32_0 = arith.constant 0 : i32
    %c0_i32_1 = arith.constant 0 : i32
    return %c0_i32, %c0_i32_0 : i32, i32
  }
  func.func @transform_3(%arg0: i32) -> (i32, i32) {
    %c0_i32 = arith.constant 0 : i32
    %c0_i32_0 = arith.constant 0 : i32
    %c0_i32_1 = arith.constant 0 : i32
    return %c0_i32, %c0_i32_0 : i32, i32
  }
  func.func @transform_4(%arg0: i32) -> (i32, i32, i32) {
    %c0_i32 = arith.constant 0 : i32
    %c0_i32_0 = arith.constant 0 : i32
    %c0_i32_1 = arith.constant 0 : i32
    return %arg0, %c0_i32, %c0_i32_0 : i32, i32, i32
  }
}

</mosaic_0001>

<llo_original>
// kernel: tpu_custom_call.1
$region0: #{tpu_custom_call.1}
  #allocation0 [shape = 'u32[]', space=smem, size = 0x4, offset = 0x4, fixed_abs, tag = 'smem constant byte address 0x4 - core index']
  #allocation1 [shape = 'u32[144,128]{1,0:T(1,128)}', space=vmem, size = 0x12000, scoped, tag = 'internal scratch']
  %s0 = inlined_call_operand.vmem [shape: f32[2,16,4], index: 0, kind: input, shape index: {}]
  %s1 = inlined_call_operand.vmem [shape: f32[2,16,4], index: 1, kind: input, shape index: {}]
  %s2 = inlined_call_operand.vmem [shape: bf16[16,32], index: 2, kind: input, shape index: {}]
  %s3 = inlined_call_operand.vmem [shape: f32[16,32], index: 3, kind: input, shape index: {}]
  %s4 = inlined_call_operand.hbm [shape: f32[2,16,32], index: 4, kind: output, shape index: {}]
  %s5 = sld [smem:[#allocation0]]
  $region49: #{tpu_custom_call.1} parent=0
    _
  %s7 = ssub.s32 1, %s5
  %s8 = scalar_select 0, %s7, %s5
  $region1: #{tpu_custom_call.1} parent=0
    #allocation2 [shape = 'u8[16384]{0}', space=vmem, size = 0x4000, scoped, tag = 'output window, operand 0']
    #allocation3 [shape = 's32[2]{0}', space=sflag, size = 0x8, scoped, tag = 'scoped memory for tpu_custom_call.1']
    %9 = vsyncpa [#allocation3], 0
    %s10 = scalar_lea.sflag [#allocation3], 1
    %11 = vsyncpa %s10, 0
    loop: start=0, step=1, limit=4
    $region2: #{tpu_custom_call.1} parent=1 // loop_pre_header
      _
    $region3: #{tpu_custom_call.1} parent=1 // loop_header
      %s13 = sphi 0, %s17
      %p14 = scmp.ge.s32.totalorder %s13, 4
      %s23 = sphi 0, %s25
      %s26 = sphi 0, %s23
      %s27 = sphi 0, %s26
      %s43 = sphi 0, %s27
      %s49 = sphi 0, %s51
      %s52 = sphi 0, %s49
      %s53 = sphi 0, %s52
      %s69 = sphi 0, %s53
      %s73 = sphi 0, %s73
      %s75 = sphi 0, %s73
      %s76 = sphi 0, %s75
      %s90 = sphi 0, %s76
      %s94 = sphi 0, %s94
      %s96 = sphi 0, %s94
      %s97 = sphi 0, %s96
      %s111 = sphi 0, %s97
      %s117 = sphi 0, %s119
      %s120 = sphi 0, %s117
      %s121 = sphi 0, %s120
      %s137 = sphi 0, %s121
    $region4: #{tpu_custom_call.1} parent=1 // loop_header_branch
      %16 = sbr.rel (%p14) target = $region8
    $region5: #{tpu_custom_call.1} parent=1 // loop_body
      %s18 = ssub.s32 %s13, 1
      %s19 = ssub.s32 %s13, 2
      %s20 = sadd.s32 %s13, 1
      %s21 = ssub.s32 %s13, %s20
      %p22 = scmp.eq.s32.totalorder %s21, 0
      %s24 = sadd.s32 %s23, 1
      %s25 = scalar_select %p22, %s23, %s24
      %p28 = pneg %p22
      %p29 = scmp.eq.s32.totalorder %s13, 1
      %p30 = por %p28, %p29
      %p31 = scmp.ne.s32.totalorder %s23, %s26
      %p32 = scmp.eq.s32.totalorder %s13, 0
      %p33 = por %p31, %p32
      %p34 = scmp.ne.s32.totalorder %s23, %s26
      %p35 = scmp.eq.s32.totalorder %s18, 1
      %p36 = por %p34, %p35
      %p37 = scmp.ne.s32.totalorder %s26, %s27
      %p38 = scmp.eq.s32.totalorder %s18, 0
      %p39 = por %p37, %p38
      %p40 = scmp.ne.s32.totalorder %s26, %s27
      %p41 = scmp.eq.s32.totalorder %s19, 1
      %p42 = por %p40, %p41
      %p44 = scmp.ne.s32.totalorder %s27, %s43
      %p45 = scmp.eq.s32.totalorder %s19, 0
      %p46 = por %p44, %p45
      %s47 = ssub.s32 %s13, %s20
      %p48 = scmp.eq.s32.totalorder %s47, 0
      %s50 = sadd.s32 %s49, 1
      %s51 = scalar_select %p48, %s49, %s50
      %p54 = pneg %p48
      %p55 = scmp.eq.s32.totalorder %s13, 1
      %p56 = por %p54, %p55
      %p57 = scmp.ne.s32.totalorder %s49, %s52
      %p58 = scmp.eq.s32.totalorder %s13, 0
      %p59 = por %p57, %p58
      %p60 = scmp.ne.s32.totalorder %s49, %s52
      %p61 = scmp.eq.s32.totalorder %s18, 1
      %p62 = por %p60, %p61
      %p63 = scmp.ne.s32.totalorder %s52, %s53
      %p64 = scmp.eq.s32.totalorder %s18, 0
      %p65 = por %p63, %p64
      %p66 = scmp.ne.s32.totalorder %s52, %s53
      %p67 = scmp.eq.s32.totalorder %s19, 1
      %p68 = por %p66, %p67
      %p70 = scmp.ne.s32.totalorder %s53, %s69
      %p71 = scmp.eq.s32.totalorder %s19, 0
      %p72 = por %p70, %p71
      %s74 = sadd.s32 %s73, 1
      %p77 = scmp.eq.s32.totalorder %s13, 1
      %p78 = scmp.ne.s32.totalorder %s73, %s75
      %p79 = scmp.eq.s32.totalorder %s13, 0
      %p80 = por %p78, %p79
      %p81 = scmp.ne.s32.totalorder %s73, %s75
      %p82 = scmp.eq.s32.totalorder %s18, 1
      %p83 = por %p81, %p82
      %p84 = scmp.ne.s32.totalorder %s75, %s76
      %p85 = scmp.eq.s32.totalorder %s18, 0
      %p86 = por %p84, %p85
      %p87 = scmp.ne.s32.totalorder %s75, %s76
      %p88 = scmp.eq.s32.totalorder %s19, 1
      %p89 = por %p87, %p88
      %p91 = scmp.ne.s32.totalorder %s76, %s90
      %p92 = scmp.eq.s32.totalorder %s19, 0
      %p93 = por %p91, %p92
      %s95 = sadd.s32 %s94, 1
      %p98 = scmp.eq.s32.totalorder %s13, 1
      %p99 = scmp.ne.s32.totalorder %s94, %s96
      %p100 = scmp.eq.s32.totalorder %s13, 0
      %p101 = por %p99, %p100
      %p102 = scmp.ne.s32.totalorder %s94, %s96
      %p103 = scmp.eq.s32.totalorder %s18, 1
      %p104 = por %p102, %p103
      %p105 = scmp.ne.s32.totalorder %s96, %s97
      %p106 = scmp.eq.s32.totalorder %s18, 0
      %p107 = por %p105, %p106
      %p108 = scmp.ne.s32.totalorder %s96, %s97
      %p109 = scmp.eq.s32.totalorder %s19, 1
      %p110 = por %p108, %p109
      %p112 = scmp.ne.s32.totalorder %s97, %s111
      %p113 = scmp.eq.s32.totalorder %s19, 0
      %p114 = por %p112, %p113
      %s115 = ssub.s32 %s13, %s20
      %p116 = scmp.eq.s32.totalorder %s115, 0
      %s118 = sadd.s32 %s117, 1
      %s119 = scalar_select %p116, %s117, %s118
      %p122 = pneg %p116
      %p123 = scmp.eq.s32.totalorder %s13, 1
      %p124 = por %p122, %p123
      %p125 = scmp.ne.s32.totalorder %s117, %s120
      %p126 = scmp.eq.s32.totalorder %s13, 0
      %p127 = por %p125, %p126
      %p128 = scmp.ne.s32.totalorder %s117, %s120
      %p129 = scmp.eq.s32.totalorder %s18, 1
      %p130 = por %p128, %p129
      %p131 = scmp.ne.s32.totalorder %s120, %s121
      %p132 = scmp.eq.s32.totalorder %s18, 0
      %p133 = por %p131, %p132
      %p134 = scmp.ne.s32.totalorder %s120, %s121
      %p135 = scmp.eq.s32.totalorder %s19, 1
      %p136 = por %p134, %p135
      %p138 = scmp.ne.s32.totalorder %s121, %s137
      %p139 = scmp.eq.s32.totalorder %s19, 0
      %p140 = por %p138, %p139
      %p141 = scmp.le.s32.totalorder 1, %s13
      %p142 = scmp.lt.s32.totalorder %s13, 3
      %p143 = pnand %p141, %p142
      %p144 = pneg %p143
      // Predicated region
      $region9: #{tpu_custom_call.1} parent=5 // pred_check
        _
      $region10: #{tpu_custom_call.1} parent=5 // pred_check_branch
        %146 = sbr.rel (%p143) target = $region12
      $region11: #{tpu_custom_call.1} parent=5 // pred_region
        %s147 = ssub.s32 %s13, 1
        // Predicated region
        $region13: #{tpu_custom_call.1} parent=11 // pred_check
          %p148 = pneg %p86
        $region14: #{tpu_custom_call.1} parent=11 // pred_check_branch
          %150 = sbr.rel (%p148) target = $region16
        $region15: #{tpu_custom_call.1} parent=11 // pred_region
          _
        $region16: #{tpu_custom_call.1} parent=11 // pred_fallthru
          _
        // Predicated region
        $region17: #{tpu_custom_call.1} parent=11 // pred_check
          %p151 = pneg %p107
        $region18: #{tpu_custom_call.1} parent=11 // pred_check_branch
          %153 = sbr.rel (%p151) target = $region20
        $region19: #{tpu_custom_call.1} parent=11 // pred_region
          _
        $region20: #{tpu_custom_call.1} parent=11 // pred_fallthru
          _
      $region12: #{tpu_custom_call.1} parent=5 // pred_fallthru
        _
      %p154 = scmp.lt.s32.totalorder %s13, 2
      // Predicated region
      $region21: #{tpu_custom_call.1} parent=5 // pred_check
        %p155 = pneg %p154
      $region22: #{tpu_custom_call.1} parent=5 // pred_check_branch
        %157 = sbr.rel (%p155) target = $region24
      $region23: #{tpu_custom_call.1} parent=5 // pred_region
        // Predicated region
        $region25: #{tpu_custom_call.1} parent=23 // pred_check
          %p158 = pneg %p33
        $region26: #{tpu_custom_call.1} parent=23 // pred_check_branch
          %160 = sbr.rel (%p158) target = $region28
        $region27: #{tpu_custom_call.1} parent=23 // pred_region
          %p161 = scmp.lt.s32.totalorder %s13, 1
          %s162 = scalar_select %p161, %s13, 1
          %s163 = smul.addr %s162, 2
          %s164 = smul.addr %s163, 8
          %s165 = scalar_lea.vmem %s0, %s164
        $region28: #{tpu_custom_call.1} parent=23 // pred_fallthru
          _
        // Predicated region
        $region29: #{tpu_custom_call.1} parent=23 // pred_check
          %p166 = pneg %p59
        $region30: #{tpu_custom_call.1} parent=23 // pred_check_branch
          %168 = sbr.rel (%p166) target = $region32
        $region31: #{tpu_custom_call.1} parent=23 // pred_region
          %p169 = scmp.lt.s32.totalorder %s13, 1
          %s170 = scalar_select %p169, %s13, 1
          %s171 = smul.addr %s170, 2
          %s172 = smul.addr %s171, 8
          %s173 = scalar_lea.vmem %s1, %s172
        $region32: #{tpu_custom_call.1} parent=23 // pred_fallthru
          _
      $region24: #{tpu_custom_call.1} parent=5 // pred_fallthru
        _
      %p174 = scmp.le.s32.totalorder 1, %s13
      %p175 = scmp.lt.s32.totalorder %s13, 3
      %p176 = pnand %p174, %p175
      %p177 = pneg %p176
      // Predicated region
      $region33: #{tpu_custom_call.1} parent=5 // pred_check
        _
      $region34: #{tpu_custom_call.1} parent=5 // pred_check_branch
        %179 = sbr.rel (%p176) target = $region36
      $region35: #{tpu_custom_call.1} parent=5 // pred_region
        %s180 = ssub.s32 %s13, 1
        %p181 = scmp.lt.s32.totalorder %s18, 1
        %s182 = scalar_select %p181, %s18, 1
        %s183 = smul.addr %s182, 2
        %s184 = smul.addr %s183, 8
        %s185 = scalar_lea.vmem %s0, %s184
        %p186 = pneg %p39
        %p187 = pneg %p36
        %p188 = scmp.lt.s32.totalorder %s18, 1
        %s189 = scalar_select %p188, %s18, 1
        %s190 = smul.addr %s189, 2
        %s191 = smul.addr %s190, 8
        %s192 = scalar_lea.vmem %s1, %s191
        %p193 = pneg %p65
        %p194 = pneg %p62
        %p195 = pneg %p86
        %p196 = pneg %p83
        %p197 = pneg %p107
        %p198 = pneg %p104
        %p199 = pneg %p133
        %p200 = pneg %p130
        %s201 = sand.u32 %s120, 1
        %s202 = scalar_lea.sflag [#allocation3], %s201
        %s203 = sand.u32 %s120, 1
        %s204 = smul.addr %s203, 16
        %s205 = scalar_lea.vmem [#allocation2], %s204
        %p206 = scmp.lt.s32.totalorder %s18, 1
        %s207 = scalar_select %p206, %s18, 1
        %s208 = smul.addr %s207, 2
        %s209 = smul.addr %s208, 8
        %s210 = scalar_lea.vmem %s0, %s209
        %p211 = scmp.lt.s32.totalorder %s18, 1
        %s212 = scalar_select %p211, %s18, 1
        %s213 = smul.addr %s212, 2
        %s214 = smul.addr %s213, 8
        %s215 = scalar_lea.vmem %s1, %s214
        %v217 = vld [vmem:[%s2] sm:$0xf]
        %v218 = vld [vmem:[%s2 + $0x4] sm:$0xf]
        %v219 = vld [vmem:[%s3] sm:$0xff]
        %v220 = vld [vmem:[%s3 + $0x8] sm:$0xff]
        %v221 = vld [vmem:[%s210] sm:$0xff]
        %v222 = vld [vmem:[%s210 + $0x8] sm:$0xff]
        %v223 = vld [vmem:[%s215] sm:$0xff]
        %v224 = vld [vmem:[%s215 + $0x8] sm:$0xff]
        %v225 = vrot.slane %v221, 7
        %v226 = vrot.slane %v222, 7
        %v227 = vlaneseq
        %v228 = vshrl.u32 %v227, 7
        %vm229 = vcmp.lt.s32.totalorder %v228, 1
        %v230 = vsel %vm229, %v225, %v226
        %v231 = vsel %vm229, %v226, %v225
        %v232 = vrot.slane %v221, 1
        %v233 = vrot.slane %v222, 1
        %vm234 = vcmp.lt.s32.totalorder %v228, 7
        %v235 = vsel %vm234, %v232, %v233
        %v236 = vsel %vm234, %v233, %v232
        %239 = vrot.lane.b32.xlu0 %v221, 4
        %v240 = vpop.permute.xlu0 %239
        %241 = vrot.lane.b32.xlu0 %v222, 4
        %v242 = vpop.permute.xlu0 %241
        %247 = vrot.lane.b32.xlu0 %v235, 8
        %v248 = vpop.permute.xlu0 %247
        %249 = vrot.lane.b32.xlu0 %v236, 8
        %v250 = vpop.permute.xlu0 %249
        %255 = vrot.lane.b32.xlu0 %v223, 12
        %v256 = vpop.permute.xlu0 %255
        %257 = vrot.lane.b32.xlu0 %v224, 12
        %v258 = vpop.permute.xlu0 %257
        %vm261 = vcmask 31744
        %v262 = vsel %vm261, %v231, %v240
        %v263 = vsel %vm261, %v230, %v242
        %vm264 = vcmask 64512
        %v265 = vsel %vm264, %v262, %v248
        %v266 = vsel %vm264, %v263, %v250
        %vm267 = vcmask 97280
        %v268 = vsel %vm267, %v265, %v256
        %v269 = vsel %vm267, %v266, %v258
        %v270 = vpack.c.bf16 %v269, %v268
        %v273 = vunpack.c.l.b16 %v217
        %v274 = vunpack.c.l.b16 %v218
        %v275 = vpack.c.b16 %v274, %v273
        %vm277 = vcmask 130048
        %v279 = vsel %vm277, %v270, 0
        %281 = vmatprep.subr.bf16.mxu0 0
        %282 = vmatpush1.bf16.msra.mxu0 %v275
        %283 = vmatprep.subr.bf16.mxu0 0
        %284 = vmatpush1.bf16.msra.mxu0 0
        %285 = vmatprep.subr.bf16.mxu0 0
        %286 = vmatpush1.bf16.msra.mxu0 0
        %287 = vmatprep.subr.bf16.mxu0 0
        %288 = vmatpush1.bf16.msra.mxu0 0
        %289 = vmatprep.subr.bf16.mxu0 0
        %290 = vmatpush1.bf16.msra.mxu0 0
        %291 = vmatprep.subr.bf16.mxu0 0
        %292 = vmatpush1.bf16.msra.mxu0 0
        %293 = vmatprep.subr.bf16.mxu0 0
        %294 = vmatpush1.bf16.msra.mxu0 0
        %295 = vmatprep.subr.bf16.mxu0 0
        %296 = vmatpush1.bf16.msra.mxu0 0
        %297 = vmatprep.subr.bf16.mxu0 0
        %298 = vmatpush1.bf16.msra.mxu0 0
        %299 = vmatprep.subr.bf16.mxu0 0
        %300 = vmatpush1.bf16.msra.mxu0 0
        %301 = vmatprep.subr.bf16.mxu0 0
        %302 = vmatpush1.bf16.msra.mxu0 0
        %303 = vmatprep.subr.bf16.mxu0 0
        %304 = vmatpush1.bf16.msra.mxu0 0
        %305 = vmatprep.subr.bf16.mxu0 0
        %306 = vmatpush1.bf16.msra.mxu0 0
        %307 = vmatprep.subr.bf16.mxu0 0
        %308 = vmatpush1.bf16.msra.mxu0 0
        %309 = vmatprep.subr.bf16.mxu0 0
        %310 = vmatpush1.bf16.msra.mxu0 0
        %311 = vmatprep.subr.bf16.mxu0 0
        %312 = vmatpush1.bf16.msra.mxu0 0
        %313 = vmatprep.mubr.bf16.mxu0 0
        %314 = vmatmul.mubr.bf16.gmra.mrb[0].mxu0 %v279
        %v315 = vpop.f32.mrb[0].mxu0
        %v316 = vadd.f32 0.0, %v315
        %v317 = vpop.f32.mrb[0].mxu0
        %v318 = vpop.f32.mrb[0].mxu0
        %v319 = vadd.f32 0.0, %v318
        %v320 = vpop.f32.mrb[0].mxu0
        %321 = vdwg.mxu0
        %v322 = vadd.f32 %v316, %v219
        %v323 = vadd.f32 %v319, %v220
        %vm324 = vcmask 261120
        %325 = vst.msk [vmem:[%s205] sm:$0xff] %vm324, %v322
        %326 = vst.msk [vmem:[%s205 + $0x8] sm:$0xff] %vm324, %v323
        %s327 = sand.u32 %s120, 1
        %s328 = scalar_lea.sflag [#allocation3], %s327
        %s329 = sand.u32 %s120, 1
        %s330 = smul.addr %s329, 16
        %s331 = scalar_lea.vmem [#allocation2], %s330
        // Predicated region
        $region37: #{tpu_custom_call.1} parent=35 // pred_check
          %p332 = pneg %p130
        $region38: #{tpu_custom_call.1} parent=35 // pred_check_branch
          %334 = sbr.rel (%p332) target = $region40
        $region39: #{tpu_custom_call.1} parent=35 // pred_region
          %s336 = ssub.s32 256, 256
          %337 = vsyncadd %s328, %s336
          %s338 = smul.addr %s18, 2
          %s339 = smul.addr %s338, 128
          %s340 = scalar_lea.hbm %s4, %s339
          %s341 = sshll.u32 %s331, 4
          %s342 = int_to_ptr.vmem [resolvable:$true] %s341
          %347 = dma.vmem_to_hbm [thread:$0]  %s342, 256, %s340, %s328, 128, 128, 8
        $region40: #{tpu_custom_call.1} parent=35 // pred_fallthru
          _
      $region36: #{tpu_custom_call.1} parent=5 // pred_fallthru
        _
      %p348 = scmp.le.s32.totalorder 2, %s13
      // Predicated region
      $region41: #{tpu_custom_call.1} parent=5 // pred_check
        %p349 = pneg %p348
      $region42: #{tpu_custom_call.1} parent=5 // pred_check_branch
        %351 = sbr.rel (%p349) target = $region44
      $region43: #{tpu_custom_call.1} parent=5 // pred_region
        %s352 = ssub.s32 %s13, 2
        // Predicated region
        $region45: #{tpu_custom_call.1} parent=43 // pred_check
          %p353 = pneg %p136
        $region46: #{tpu_custom_call.1} parent=43 // pred_check_branch
          %355 = sbr.rel (%p353) target = $region48
        $region47: #{tpu_custom_call.1} parent=43 // pred_region
          %s356 = sand.u32 %s121, 1
          %s357 = scalar_lea.sflag [#allocation3], %s356
          %s358 = sand.u32 %s121, 1
          %s359 = smul.addr %s358, 16
          %s360 = scalar_lea.vmem [#allocation2], %s359
          %361 = dma.done %s357, 256
        $region48: #{tpu_custom_call.1} parent=43 // pred_fallthru
          _
      $region44: #{tpu_custom_call.1} parent=5 // pred_fallthru
        _
    $region6: #{tpu_custom_call.1} parent=1 // loop_footer
      %s17 = sadd.s32 1, %s13
    $region7: #{tpu_custom_call.1} parent=1 // loop_footer_branch
      %12 = sbr.rel target = $region3
    $region8: #{tpu_custom_call.1} parent=1 // loop_exit
      _
    %362 = vsyncpa [#allocation3], 1
    %s363 = scalar_lea.sflag [#allocation3], 1
    %364 = vsyncpa %s363, 1

</llo_original>
